<compile_context>
chip_gen: v7x
topology: tpu7x:2x2x1
jax: 0.10.0
libtpu: 0.0.40
codegen_flags: <defaults>
</compile_context>

<pallas_src>
import functools

import jax
import jax.numpy as jnp
from jax.experimental import pallas as pl
from jax.experimental.pallas import tpu as pltpu


def _se_kernel(x_ref, w1t_ref, b1_ref, w2t_ref, b2_ref, o_ref):
    # x_ref:   (B, C, HW)   block of B image planes, lane-dense in HW
    # w1t_ref: (C, Cr)      conv1 weight (BN1-folded), transposed
    # b1_ref:  (1, Cr)      folded BN1 bias
    # w2t_ref: (Cr, C)      conv2 weight (BN2-folded), transposed
    # b2_ref:  (1, C)       folded BN2 bias
    # o_ref:   (B, C, HW)
    x = x_ref[...]

    # Squeeze: global average pool over the spatial (lane) axis, accumulate in f32.
    pooled = jnp.mean(x.astype(jnp.float32), axis=2)          # (B, C) f32

    # Excite: folded 1x1 conv -> ReLU -> folded 1x1 conv -> hsigmoid (all f32).
    h = jnp.dot(pooled, w1t_ref[...], preferred_element_type=jnp.float32) + b1_ref[...]
    h = jnp.maximum(h, 0.0)
    g = jnp.dot(h, w2t_ref[...], preferred_element_type=jnp.float32) + b2_ref[...]
    g = jnp.clip(g + 3.0, 0.0, 6.0) * (1.0 / 6.0)              # hsigmoid = relu6(x+3)/6

    # Scale: broadcast the per-(image, channel) gate over the spatial lanes,
    # multiplying in the input dtype (no materialized f32 copy of the block).
    o_ref[...] = x * g.astype(o_ref.dtype)[:, :, None]


def _tpu_config():
    """Per-generation block budget / VMEM limit / TensorCore-count heuristics."""
    try:
        kind = jax.devices()[0].device_kind.lower()
    except Exception:  # pragma: no cover - e.g. no devices during tracing tests
        kind = ""
    if "v7" in kind:
        # 64 MiB/TC physical, 32 MiB scoped default -> raise the limit; 2 TCs.
        return {"two_tc": True, "budget": 24 << 20, "vmem_limit": 48 << 20}
    if "v6" in kind:
        # 128 MiB physical, 32 MiB scoped default; single TC.
        return {"two_tc": False, "budget": 20 << 20, "vmem_limit": None}
    # v5e (16 MiB scoped default) and anything unknown: stay conservative.
    return {"two_tc": False, "budget": 8 << 20, "vmem_limit": None}


def _pick_batch_block(n: int, c: int, hw: int, itemsize: int,
                      budget_bytes: int, two_tc: bool) -> int:
    """Block of B images whose double-buffered in+out tiles fit the VMEM budget.

    Uses a cdiv grid (no divisor search); on 2-TC targets the step count is kept
    >= 2 and even so 'parallel' sharding keeps both cores busy.
    """
    per_image = 2 * 2 * c * hw * itemsize          # (in + out) x double-buffered
    b = max(1, min(n, budget_bytes // per_image))
    if two_tc and n >= 2:
        steps = -(-n // b)
        steps = max(steps, 2)
        if steps % 2 == 1:
            steps += 1
        steps = min(steps, n)
        b = -(-n // steps)
    return int(b)


def fold_se_params(w1, gamma1, beta1, mean1, var1,
                   w2, gamma2, beta2, mean2, var2, *, eps: float = 1e-5):
    """Fold eval-mode BatchNorm into the 1x1 conv weights (do this ONCE per weights).

    w1: (C//r, C), w2: (C, C//r); returns (w1t, b1, w2t, b2) ready for the kernel.
    """
    Cr, C = w1.shape
    s1 = gamma1 / jnp.sqrt(var1 + eps)
    s2 = gamma2 / jnp.sqrt(var2 + eps)
    w1t = (w1 * s1[:, None]).T.astype(jnp.float32)             # (C, Cr)
    b1 = (beta1 - s1 * mean1).reshape(1, Cr).astype(jnp.float32)
    w2t = (w2 * s2[:, None]).T.astype(jnp.float32)             # (Cr, C)
    b2 = (beta2 - s2 * mean2).reshape(1, C).astype(jnp.float32)
    return w1t, b1, w2t, b2


def se_module_folded(x, w1t, b1, w2t, b2):
    """Pallas SeModule.forward with pre-folded BN (preferred entry point)."""
    N, C, H, W = x.shape
    Cr = w1t.shape[1]
    HW = H * W

    cfg = _tpu_config()
    B = _pick_batch_block(N, C, HW, x.dtype.itemsize, cfg["budget"], cfg["two_tc"])
    grid = (pl.cdiv(N, B),)

    # Lane-dense layout: last dim = H*W (multiple of 128), sublane dim = C.
    x_flat = x.reshape(N, C, HW)

    flops = 2 * N * C * HW + 4 * N * C * Cr                    # pool + scale + 2 matmuls
    bytes_accessed = (2 * N * C * HW * x.dtype.itemsize
                      + 4 * (w1t.size + b1.size + w2t.size + b2.size))
    cost = pl.CostEstimate(flops=flops, transcendentals=0,
                           bytes_accessed=bytes_accessed)

    cp_kwargs = {"dimension_semantics": ("parallel",)}
    if cfg["vmem_limit"] is not None:
        cp_kwargs["vmem_limit_bytes"] = cfg["vmem_limit"]

    out_flat = pl.pallas_call(
        _se_kernel,
        out_shape=jax.ShapeDtypeStruct((N, C, HW), x.dtype),
        grid=grid,
        in_specs=[
            pl.BlockSpec((B, C, HW), lambda i: (i, 0, 0)),
            pl.BlockSpec((C, Cr), lambda i: (0, 0)),
            pl.BlockSpec((1, Cr), lambda i: (0, 0)),
            pl.BlockSpec((Cr, C), lambda i: (0, 0)),
            pl.BlockSpec((1, C), lambda i: (0, 0)),
        ],
        out_specs=pl.BlockSpec((B, C, HW), lambda i: (i, 0, 0)),
        compiler_params=pltpu.CompilerParams(**cp_kwargs),
        cost_estimate=cost,
    )(x_flat, w1t, b1, w2t, b2)

    return out_flat.reshape(N, C, H, W)


def se_module(x, w1, gamma1, beta1, mean1, var1,
              w2, gamma2, beta2, mean2, var2, *, eps: float = 1e-5):
    """Convenience wrapper matching the PyTorch parameterization (folds BN per call).

    For repeated inference with fixed weights, call fold_se_params once and reuse
    se_module_folded to keep the fold math off the per-call path.
    """
    folded = fold_se_params(w1, gamma1, beta1, mean1, var1,
                            w2, gamma2, beta2, mean2, var2, eps=eps)
    return se_module_folded(x, *folded)


if __name__ == "__main__":
    key = jax.random.PRNGKey(0)
    N, C, H, W = 2, 32, 16, 16          # in_size=32, reduction=4 -> hidden=8
    reduction = 4
    Cr = C // reduction
    eps = 1e-5

    ks = jax.random.split(key, 12)
    x = jax.random.normal(ks[0], (N, C, H, W), dtype=jnp.float32)
    w1 = 0.2 * jax.random.normal(ks[1], (Cr, C), dtype=jnp.float32)
    w2 = 0.2 * jax.random.normal(ks[2], (C, Cr), dtype=jnp.float32)
    gamma1 = 1.0 + 0.1 * jax.random.normal(ks[3], (Cr,), dtype=jnp.float32)
    beta1 = 0.1 * jax.random.normal(ks[4], (Cr,), dtype=jnp.float32)
    mean1 = 0.1 * jax.random.normal(ks[5], (Cr,), dtype=jnp.float32)
    var1 = jnp.abs(1.0 + 0.1 * jax.random.normal(ks[6], (Cr,), dtype=jnp.float32))
    gamma2 = 1.0 + 0.1 * jax.random.normal(ks[7], (C,), dtype=jnp.float32)
    beta2 = 0.1 * jax.random.normal(ks[8], (C,), dtype=jnp.float32)
    mean2 = 0.1 * jax.random.normal(ks[9], (C,), dtype=jnp.float32)
    var2 = jnp.abs(1.0 + 0.1 * jax.random.normal(ks[10], (C,), dtype=jnp.float32))

    # Hoist the BN fold out of the per-call path (review item): fold once, then
    # run the Pallas kernel on the folded weights.
    folded = fold_se_params(w1, gamma1, beta1, mean1, var1,
                            w2, gamma2, beta2, mean2, var2, eps=eps)
    folded = jax.tree_util.tree_map(jax.block_until_ready, folded)

    run = jax.jit(se_module_folded)
    out = run(x, *folded)
    out = jax.block_until_ready(out)
    assert out.shape == (N, C, H, W), out.shape

    # Pure-JAX reference of SeModule.forward (eval-mode BatchNorm, unfolded).
    pooled = jnp.mean(x, axis=(2, 3))                                  # (N, C)
    y = pooled @ w1.T                                                  # (N, Cr)
    y = (y - mean1) / jnp.sqrt(var1 + eps) * gamma1 + beta1
    y = jnp.maximum(y, 0.0)
    y = y @ w2.T                                                       # (N, C)
    y = (y - mean2) / jnp.sqrt(var2 + eps) * gamma2 + beta2
    gate = jnp.clip(y + 3.0, 0.0, 6.0) / 6.0                           # hsigmoid
    ref = x * gate[:, :, None, None]

    assert jnp.allclose(out, ref, atol=1e-5, rtol=1e-5), float(
        jnp.max(jnp.abs(out - ref))
    )

    print("KERNEL_OK")
</pallas_src>

<mosaic_0001>
module attributes {stable_mosaic.version = 11 : i64} {
  func.func @_se_kernel(%arg0: i32, %arg1: memref<2x32x256xf32, #tpu.memory_space<vmem>>, %arg2: memref<32x8xf32, #tpu.memory_space<vmem>>, %arg3: memref<1x8xf32, #tpu.memory_space<vmem>>, %arg4: memref<8x32xf32, #tpu.memory_space<vmem>>, %arg5: memref<1x32xf32, #tpu.memory_space<vmem>>, %arg6: memref<2x32x256xf32, #tpu.memory_space<vmem>>) attributes {dimension_semantics = [#tpu.dimension_semantics<parallel>], iteration_bounds = array<i64: 1>, scalar_prefetch = 0 : i64, scratch_operands = 0 : i64, tpu.core_type = #tpu.core_type<tc>, window_params = [{transform_indices = @transform_0, window_bounds = array<i64: 2, 32, 256>}, {pipeline_mode = #tpu.pipeline_mode<synchronous>, transform_indices = @transform_1, window_bounds = array<i64: 32, 8>}, {pipeline_mode = #tpu.pipeline_mode<synchronous>, transform_indices = @transform_2, window_bounds = array<i64: 1, 8>}, {pipeline_mode = #tpu.pipeline_mode<synchronous>, transform_indices = @transform_3, window_bounds = array<i64: 8, 32>}, {pipeline_mode = #tpu.pipeline_mode<synchronous>, transform_indices = @transform_4, window_bounds = array<i64: 1, 32>}, {transform_indices = @transform_5, window_bounds = array<i64: 2, 32, 256>}]} {
    %c0 = arith.constant 0 : index
    %c0_0 = arith.constant 0 : index
    %c0_1 = arith.constant 0 : index
    %0 = vector.load %arg1[%c0, %c0_0, %c0_1] : memref<2x32x256xf32, #tpu.memory_space<vmem>>, vector<2x32x256xf32>
    %cst = arith.constant dense<0.000000e+00> : vector<2x32xf32>
    %1 = vector.multi_reduction <add>, %0, %cst [2] : vector<2x32x256xf32> to vector<2x32xf32>
    %cst_2 = arith.constant 2.560000e+02 : f32
    %2 = vector.broadcast %cst_2 : f32 to vector<2x32xf32>
    %3 = arith.divf %1, %2 : vector<2x32xf32>
    %c0_3 = arith.constant 0 : index
    %c0_4 = arith.constant 0 : index
    %4 = vector.load %arg2[%c0_3, %c0_4] : memref<32x8xf32, #tpu.memory_space<vmem>>, vector<32x8xf32>
    %cst_5 = arith.constant dense<0.000000e+00> : vector<2x8xf32>
    %5 = tpu.matmul %3, %4, %cst_5 {dimension_numbers = #tpu.dot_dimension_numbers<[1], [0], [0], [1], [0, 0, 1, 1], [], []>} : vector<2x32xf32>, vector<32x8xf32>, vector<2x8xf32> -> vector<2x8xf32>
    %c0_6 = arith.constant 0 : index
    %c0_7 = arith.constant 0 : index
    %6 = vector.load %arg3[%c0_6, %c0_7] : memref<1x8xf32, #tpu.memory_space<vmem>>, vector<1x8xf32>
    %7 = vector.broadcast %6 : vector<1x8xf32> to vector<2x8xf32>
    %8 = arith.addf %5, %7 : vector<2x8xf32>
    %cst_8 = arith.constant 0.000000e+00 : f32
    %9 = vector.broadcast %cst_8 : f32 to vector<2x8xf32>
    %10 = arith.maximumf %8, %9 : vector<2x8xf32>
    %c0_9 = arith.constant 0 : index
    %c0_10 = arith.constant 0 : index
    %11 = vector.load %arg4[%c0_9, %c0_10] : memref<8x32xf32, #tpu.memory_space<vmem>>, vector<8x32xf32>
    %cst_11 = arith.constant dense<0.000000e+00> : vector<2x32xf32>
    %12 = tpu.matmul %10, %11, %cst_11 {dimension_numbers = #tpu.dot_dimension_numbers<[1], [0], [0], [1], [0, 0, 1, 1], [], []>} : vector<2x8xf32>, vector<8x32xf32>, vector<2x32xf32> -> vector<2x32xf32>
    %c0_12 = arith.constant 0 : index
    %c0_13 = arith.constant 0 : index
    %13 = vector.load %arg5[%c0_12, %c0_13] : memref<1x32xf32, #tpu.memory_space<vmem>>, vector<1x32xf32>
    %14 = vector.broadcast %13 : vector<1x32xf32> to vector<2x32xf32>
    %15 = arith.addf %12, %14 : vector<2x32xf32>
    %cst_14 = arith.constant 3.000000e+00 : f32
    %16 = vector.broadcast %cst_14 : f32 to vector<2x32xf32>
    %17 = arith.addf %15, %16 : vector<2x32xf32>
    %cst_15 = arith.constant 0.000000e+00 : f32
    %cst_16 = arith.constant 6.000000e+00 : f32
    %18 = vector.broadcast %cst_15 : f32 to vector<2x32xf32>
    %19 = arith.maximumf %18, %17 : vector<2x32xf32>
    %20 = vector.broadcast %cst_16 : f32 to vector<2x32xf32>
    %21 = arith.minimumf %20, %19 : vector<2x32xf32>
    %cst_17 = arith.constant 0.166666672 : f32
    %22 = vector.broadcast %cst_17 : f32 to vector<2x32xf32>
    %23 = arith.mulf %21, %22 : vector<2x32xf32>
    %24 = vector.shape_cast %23 : vector<2x32xf32> to vector<2x32x1xf32>
    %25 = vector.broadcast %24 : vector<2x32x1xf32> to vector<2x32x256xf32>
    %26 = arith.mulf %0, %25 : vector<2x32x256xf32>
    %c0_18 = arith.constant 0 : index
    %c0_19 = arith.constant 0 : index
    %c0_20 = arith.constant 0 : index
    %27 = vector.load %arg6[%c0_18, %c0_19, %c0_20] : memref<2x32x256xf32, #tpu.memory_space<vmem>>, vector<2x32x256xf32>
    tpu.vector_store %arg6[%c0_18, %c0_19, %c0_20], %26 {strides = array<i32>} : memref<2x32x256xf32, #tpu.memory_space<vmem>>, vector<2x32x256xf32>,
    return
  }
  func.func @transform_0(%arg0: i32) -> (i32, i32, i32) {
    %c0_i32 = arith.constant 0 : i32
    %c0_i32_0 = arith.constant 0 : i32
    %c0_i32_1 = arith.constant 0 : i32
    return %arg0, %c0_i32, %c0_i32_0 : i32, i32, i32
  }
  func.func @transform_1(%arg0: i32) -> (i32, i32) {
    %c0_i32 = arith.constant 0 : i32
    %c0_i32_0 = arith.constant 0 : i32
    %c0_i32_1 = arith.constant 0 : i32
    return %c0_i32, %c0_i32_0 : i32, i32
  }
  func.func @transform_2(%arg0: i32) -> (i32, i32) {
    %c0_i32 = arith.constant 0 : i32
    %c0_i32_0 = arith.constant 0 : i32
    %c0_i32_1 = arith.constant 0 : i32
    return %c0_i32, %c0_i32_0 : i32, i32
  }
  func.func @transform_3(%arg0: i32) -> (i32, i32) {
    %c0_i32 = arith.constant 0 : i32
    %c0_i32_0 = arith.constant 0 : i32
    %c0_i32_1 = arith.constant 0 : i32
    return %c0_i32, %c0_i32_0 : i32, i32
  }
  func.func @transform_4(%arg0: i32) -> (i32, i32) {
    %c0_i32 = arith.constant 0 : i32
    %c0_i32_0 = arith.constant 0 : i32
    %c0_i32_1 = arith.constant 0 : i32
    return %c0_i32, %c0_i32_0 : i32, i32
  }
  func.func @transform_5(%arg0: i32) -> (i32, i32, i32) {
    %c0_i32 = arith.constant 0 : i32
    %c0_i32_0 = arith.constant 0 : i32
    %c0_i32_1 = arith.constant 0 : i32
    return %arg0, %c0_i32, %c0_i32_0 : i32, i32, i32
  }
}

</mosaic_0001>

<llo_original>
// kernel: se_module_folded.1
$region0: #{se_module_folded.1}
  #allocation0 [shape = 'u32[]', space=smem, size = 0x4, offset = 0x4, fixed_abs, tag = 'smem constant byte address 0x4 - core index']
  #allocation1 [shape = 'u32[144,128]{1,0:T(1,128)}', space=vmem, size = 0x12000, scoped, tag = 'internal scratch']
  %s0 = inlined_call_operand.vmem [shape: f32[2,32,256], index: 0, kind: input, shape index: {}]
  %s1 = inlined_call_operand.vmem [shape: f32[32,8], index: 1, kind: input, shape index: {}]
  %s2 = inlined_call_operand.vmem [shape: f32[1,8], index: 2, kind: input, shape index: {}]
  %s3 = inlined_call_operand.vmem [shape: f32[8,32], index: 3, kind: input, shape index: {}]
  %s4 = inlined_call_operand.vmem [shape: f32[1,32], index: 4, kind: input, shape index: {}]
  %s5 = inlined_call_operand.vmem [shape: f32[2,32,256], index: 5, kind: output, shape index: {}]
  %s6 = sld [smem:[#allocation0]]
  $region30: #{se_module_folded.1} parent=0
    _
  %s8 = ssub.s32 1, %s6
  %s9 = scalar_select 0, %s8, %s6
  // Predicated region
  $region2: #{se_module_folded.1} parent=0 // pred_check
    _
  $region3: #{se_module_folded.1} parent=0 // pred_check_branch
    %11 = sbr.rel (0) target = $region5
  $region4: #{se_module_folded.1} parent=0 // pred_region
    _
  $region5: #{se_module_folded.1} parent=0 // pred_fallthru
    _
  // Predicated region
  $region6: #{se_module_folded.1} parent=0 // pred_check
    _
  $region7: #{se_module_folded.1} parent=0 // pred_check_branch
    %13 = sbr.rel (0) target = $region9
  $region8: #{se_module_folded.1} parent=0 // pred_region
    _
  $region9: #{se_module_folded.1} parent=0 // pred_fallthru
    _
  // Predicated region
  $region10: #{se_module_folded.1} parent=0 // pred_check
    _
  $region11: #{se_module_folded.1} parent=0 // pred_check_branch
    %15 = sbr.rel (0) target = $region13
  $region12: #{se_module_folded.1} parent=0 // pred_region
    _
  $region13: #{se_module_folded.1} parent=0 // pred_fallthru
    _
  // Predicated region
  $region14: #{se_module_folded.1} parent=0 // pred_check
    _
  $region15: #{se_module_folded.1} parent=0 // pred_check_branch
    %17 = sbr.rel (0) target = $region17
  $region16: #{se_module_folded.1} parent=0 // pred_region
    _
  $region17: #{se_module_folded.1} parent=0 // pred_fallthru
    _
  // Predicated region
  $region18: #{se_module_folded.1} parent=0 // pred_check
    _
  $region19: #{se_module_folded.1} parent=0 // pred_check_branch
    %19 = sbr.rel (0) target = $region21
  $region20: #{se_module_folded.1} parent=0 // pred_region
    _
  $region21: #{se_module_folded.1} parent=0 // pred_fallthru
    _
  %v20 = vld [vmem:[%s0] sm:$0xff]
  %v21 = vld [vmem:[%s0 + $0x8] sm:$0xff]
  %v22 = vld [vmem:[%s0 + $0x10] sm:$0xff]
  %v23 = vld [vmem:[%s0 + $0x18] sm:$0xff]
  %v24 = vld [vmem:[%s0 + $0x20] sm:$0xff]
  %v25 = vld [vmem:[%s0 + $0x28] sm:$0xff]
  %v26 = vld [vmem:[%s0 + $0x30] sm:$0xff]
  %v27 = vld [vmem:[%s0 + $0x38] sm:$0xff]
  %v28 = vld [vmem:[%s0 + $0x40] sm:$0xff]
  %v29 = vld [vmem:[%s0 + $0x48] sm:$0xff]
  %v30 = vld [vmem:[%s0 + $0x50] sm:$0xff]
  %v31 = vld [vmem:[%s0 + $0x58] sm:$0xff]
  %v32 = vld [vmem:[%s0 + $0x60] sm:$0xff]
  %v33 = vld [vmem:[%s0 + $0x68] sm:$0xff]
  %v34 = vld [vmem:[%s0 + $0x70] sm:$0xff]
  %v35 = vld [vmem:[%s0 + $0x78] sm:$0xff]
  %v36 = vadd.f32 %v20, %v21
  %37 = vadd.xlane.f32.xlu0 %v36
  %v38 = vpop.xlane.xlu0 %37
  %v39 = vadd.f32 %v22, %v23
  %40 = vadd.xlane.f32.xlu0 %v39
  %v41 = vpop.xlane.xlu0 %40
  %v42 = vadd.f32 %v24, %v25
  %43 = vadd.xlane.f32.xlu0 %v42
  %v44 = vpop.xlane.xlu0 %43
  %v45 = vadd.f32 %v26, %v27
  %46 = vadd.xlane.f32.xlu0 %v45
  %v47 = vpop.xlane.xlu0 %46
  %v48 = vadd.f32 %v28, %v29
  %49 = vadd.xlane.f32.xlu0 %v48
  %v50 = vpop.xlane.xlu0 %49
  %v51 = vadd.f32 %v30, %v31
  %52 = vadd.xlane.f32.xlu0 %v51
  %v53 = vpop.xlane.xlu0 %52
  %v54 = vadd.f32 %v32, %v33
  %55 = vadd.xlane.f32.xlu0 %v54
  %v56 = vpop.xlane.xlu0 %55
  %v57 = vadd.f32 %v34, %v35
  %58 = vadd.xlane.f32.xlu0 %v57
  %v59 = vpop.xlane.xlu0 %58
  %v60 = vrcp.pop 256.0
  %v61 = vmul.f32 %v38, %v60
  %v62 = vmul.f32 %v41, %v60
  %v63 = vmul.f32 %v44, %v60
  %v64 = vmul.f32 %v47, %v60
  %v65 = vmul.f32 %v50, %v60
  %v66 = vmul.f32 %v53, %v60
  %v67 = vmul.f32 %v56, %v60
  %v68 = vmul.f32 %v59, %v60
  %v69 = vld [vmem:[%s1] sm:$0xff]
  %v70 = vld [vmem:[%s1 + $0x8] sm:$0xff]
  %v71 = vld [vmem:[%s1 + $0x10] sm:$0xff]
  %v72 = vld [vmem:[%s1 + $0x18] sm:$0xff]
  %v73 = vld [vmem:[%s2] sm:$0x1]
  %v75 = vlaneseq
  %v76 = vshrl.u32 %v75, 7
  %v77 = vsub.s32 0, %v76
  %v78 = vrot.slane %v73, %v77
  %v88 = vlaneseq
  %v89 = vand.u32 %v88, 127
  %v90 = vlaneseq
  %v91 = vshrl.u32 %v90, 7
  %v92 = vsub.s32 %v89, %v91
  %v93 = vrot.slane %v61, %v92
  %v94 = vadd.s32 %v89, 4294967288
  %v95 = vlaneseq
  %v96 = vshrl.u32 %v95, 7
  %v97 = vsub.s32 %v94, %v96
  %v98 = vrot.slane %v62, %v97
  %vm99 = vcmask 130112
  %v100 = vsel %vm99, %v98, %v93
  %v101 = vadd.s32 %v89, 4294967280
  %v102 = vlaneseq
  %v103 = vshrl.u32 %v102, 7
  %v104 = vsub.s32 %v101, %v103
  %v105 = vrot.slane %v63, %v104
  %vm106 = vcmask 195712
  %v107 = vsel %vm106, %v105, %v100
  %v108 = vadd.s32 %v89, 4294967272
  %v109 = vlaneseq
  %v110 = vshrl.u32 %v109, 7
  %v111 = vsub.s32 %v108, %v110
  %v112 = vrot.slane %v64, %v111
  %vm113 = vcmask 261312
  %v114 = vsel %vm113, %v112, %v107
  %v115 = vlaneseq
  %v116 = vshrl.u32 %v115, 7
  %v117 = vsub.s32 %v89, %v116
  %v118 = vrot.slane %v65, %v117
  %v119 = vlaneseq
  %v120 = vshrl.u32 %v119, 7
  %v121 = vsub.s32 %v94, %v120
  %v122 = vrot.slane %v66, %v121
  %v123 = vsel %vm99, %v122, %v118
  %v124 = vlaneseq
  %v125 = vshrl.u32 %v124, 7
  %v126 = vsub.s32 %v101, %v125
  %v127 = vrot.slane %v67, %v126
  %v128 = vsel %vm106, %v127, %v123
  %v129 = vlaneseq
  %v130 = vshrl.u32 %v129, 7
  %v131 = vsub.s32 %v108, %v130
  %v132 = vrot.slane %v68, %v131
  %v133 = vsel %vm113, %v132, %v128
  %vm134 = vcmask 1041409
  %v135 = vsel %vm134, %v133, %v114
  %vm136 = vcmask 261120
  %v137 = vsel %vm136, %v135, 0
  %139 = vmatprep.subr.mxu0 0.0
  %140 = vmatpush1.msra.mxu0 %v69
  %141 = vmatprep.subr.mxu0 0.0
  %142 = vmatpush1.msra.mxu0 %v70
  %143 = vmatprep.subr.mxu0 0.0
  %144 = vmatpush1.msra.mxu0 %v71
  %145 = vmatprep.subr.mxu0 0.0
  %146 = vmatpush1.msra.mxu0 %v72
  %147 = vmatprep.subr.mxu0 0.0
  %148 = vmatpush1.msra.mxu0 0.0
  %149 = vmatprep.subr.mxu0 0.0
  %150 = vmatpush1.msra.mxu0 0.0
  %151 = vmatprep.subr.mxu0 0.0
  %152 = vmatpush1.msra.mxu0 0.0
  %153 = vmatprep.subr.mxu0 0.0
  %154 = vmatpush1.msra.mxu0 0.0
  %155 = vmatprep.subr.mxu0 0.0
  %156 = vmatpush1.msra.mxu0 0.0
  %157 = vmatprep.subr.mxu0 0.0
  %158 = vmatpush1.msra.mxu0 0.0
  %159 = vmatprep.subr.mxu0 0.0
  %160 = vmatpush1.msra.mxu0 0.0
  %161 = vmatprep.subr.mxu0 0.0
  %162 = vmatpush1.msra.mxu0 0.0
  %163 = vmatprep.subr.mxu0 0.0
  %164 = vmatpush1.msra.mxu0 0.0
  %165 = vmatprep.subr.mxu0 0.0
  %166 = vmatpush1.msra.mxu0 0.0
  %167 = vmatprep.subr.mxu0 0.0
  %168 = vmatpush1.msra.mxu0 0.0
  %169 = vmatprep.subr.mxu0 0.0
  %170 = vmatpush1.msra.mxu0 0.0
  %171 = vmatprep.subr.mxu0 0.0
  %172 = vmatpush1.msra.mxu0 0.0
  %173 = vmatprep.subr.mxu0 0.0
  %174 = vmatpush1.msra.mxu0 0.0
  %175 = vmatprep.subr.mxu0 0.0
  %176 = vmatpush1.msra.mxu0 0.0
  %177 = vmatprep.subr.mxu0 0.0
  %178 = vmatpush1.msra.mxu0 0.0
  %179 = vmatprep.subr.mxu0 0.0
  %180 = vmatpush1.msra.mxu0 0.0
  %181 = vmatprep.subr.mxu0 0.0
  %182 = vmatpush1.msra.mxu0 0.0
  %183 = vmatprep.subr.mxu0 0.0
  %184 = vmatpush1.msra.mxu0 0.0
  %185 = vmatprep.subr.mxu0 0.0
  %186 = vmatpush1.msra.mxu0 0.0
  %187 = vmatprep.subr.mxu0 0.0
  %188 = vmatpush1.msra.mxu0 0.0
  %189 = vmatprep.subr.mxu0 0.0
  %190 = vmatpush1.msra.mxu0 0.0
  %191 = vmatprep.subr.mxu0 0.0
  %192 = vmatpush1.msra.mxu0 0.0
  %193 = vmatprep.subr.mxu0 0.0
  %194 = vmatpush1.msra.mxu0 0.0
  %195 = vmatprep.subr.mxu0 0.0
  %196 = vmatpush1.msra.mxu0 0.0
  %197 = vmatprep.subr.mxu0 0.0
  %198 = vmatpush1.msra.mxu0 0.0
  %199 = vmatprep.subr.mxu0 0.0
  %200 = vmatpush1.msra.mxu0 0.0
  %201 = vmatprep.subr.mxu0 0.0
  %202 = vmatpush1.msra.mxu0 0.0
  %203 = vmatprep.mubr.f32.mxu0 0.0
  %204 = vmatmul.mubr.f32.gmra.mrb[0].mxu0 %v137
  %v205 = vpop.f32.mrb[0].mxu0
  %v206 = vadd.f32 %v78, %v205
  %v207 = vpop.f32.mrb[0].mxu0
  %208 = vdwg.mxu0
  %v209 = vmax.f32 %v206, 0.0
  %v210 = vld [vmem:[%s3] sm:$0xff]
  %v211 = vld [vmem:[%s4] sm:$0x1]
  %v213 = vlaneseq
  %v214 = vshrl.u32 %v213, 7
  %v215 = vsub.s32 0, %v214
  %v216 = vrot.slane %v211, %v215
  %vm218 = vcmask 64512
  %v220 = vsel %vm218, %v209, 0
  %222 = vmatprep.subr.mxu0 0.0
  %223 = vmatpush1.msra.mxu0 %v210
  %224 = vmatprep.subr.mxu0 0.0
  %225 = vmatpush1.msra.mxu0 0.0
  %226 = vmatprep.subr.mxu0 0.0
  %227 = vmatpush1.msra.mxu0 0.0
  %228 = vmatprep.subr.mxu0 0.0
  %229 = vmatpush1.msra.mxu0 0.0
  %230 = vmatprep.subr.mxu0 0.0
  %231 = vmatpush1.msra.mxu0 0.0
  %232 = vmatprep.subr.mxu0 0.0
  %233 = vmatpush1.msra.mxu0 0.0
  %234 = vmatprep.subr.mxu0 0.0
  %235 = vmatpush1.msra.mxu0 0.0
  %236 = vmatprep.subr.mxu0 0.0
  %237 = vmatpush1.msra.mxu0 0.0
  %238 = vmatprep.subr.mxu0 0.0
  %239 = vmatpush1.msra.mxu0 0.0
  %240 = vmatprep.subr.mxu0 0.0
  %241 = vmatpush1.msra.mxu0 0.0
  %242 = vmatprep.subr.mxu0 0.0
  %243 = vmatpush1.msra.mxu0 0.0
  %244 = vmatprep.subr.mxu0 0.0
  %245 = vmatpush1.msra.mxu0 0.0
  %246 = vmatprep.subr.mxu0 0.0
  %247 = vmatpush1.msra.mxu0 0.0
  %248 = vmatprep.subr.mxu0 0.0
  %249 = vmatpush1.msra.mxu0 0.0
  %250 = vmatprep.subr.mxu0 0.0
  %251 = vmatpush1.msra.mxu0 0.0
  %252 = vmatprep.subr.mxu0 0.0
  %253 = vmatpush1.msra.mxu0 0.0
  %254 = vmatprep.subr.mxu0 0.0
  %255 = vmatpush1.msra.mxu0 0.0
  %256 = vmatprep.subr.mxu0 0.0
  %257 = vmatpush1.msra.mxu0 0.0
  %258 = vmatprep.subr.mxu0 0.0
  %259 = vmatpush1.msra.mxu0 0.0
  %260 = vmatprep.subr.mxu0 0.0
  %261 = vmatpush1.msra.mxu0 0.0
  %262 = vmatprep.subr.mxu0 0.0
  %263 = vmatpush1.msra.mxu0 0.0
  %264 = vmatprep.subr.mxu0 0.0
  %265 = vmatpush1.msra.mxu0 0.0
  %266 = vmatprep.subr.mxu0 0.0
  %267 = vmatpush1.msra.mxu0 0.0
  %268 = vmatprep.subr.mxu0 0.0
  %269 = vmatpush1.msra.mxu0 0.0
  %270 = vmatprep.subr.mxu0 0.0
  %271 = vmatpush1.msra.mxu0 0.0
  %272 = vmatprep.subr.mxu0 0.0
  %273 = vmatpush1.msra.mxu0 0.0
  %274 = vmatprep.subr.mxu0 0.0
  %275 = vmatpush1.msra.mxu0 0.0
  %276 = vmatprep.subr.mxu0 0.0
  %277 = vmatpush1.msra.mxu0 0.0
  %278 = vmatprep.subr.mxu0 0.0
  %279 = vmatpush1.msra.mxu0 0.0
  %280 = vmatprep.subr.mxu0 0.0
  %281 = vmatpush1.msra.mxu0 0.0
  %282 = vmatprep.subr.mxu0 0.0
  %283 = vmatpush1.msra.mxu0 0.0
  %284 = vmatprep.subr.mxu0 0.0
  %285 = vmatpush1.msra.mxu0 0.0
  %286 = vmatprep.mubr.f32.mxu0 0.0
  %287 = vmatmul.mubr.f32.gmra.mrb[0].mxu0 %v220
  %v288 = vpop.f32.mrb[0].mxu0
  %v289 = vadd.f32 %v216, %v288
  %v290 = vpop.f32.mrb[0].mxu0
  %291 = vdwg.mxu0
  %v292 = vadd.f32 %v289, 3.0
  %v293 = vmax.f32 %v292, 0.0
  %v294 = vmin.f32 %v293, 6.0
  %v295 = vmul.f32 %v294, 0.16666667
  %v296 = vlaneseq
  %v297 = vshrl.u32 %v296, 7
  %v298 = vsub.s32 0, %v297
  %v299 = vrot.slane %v295, %v298
  %301 = vbcast.lane.b32.xlu0 %v299, 256
  %v302 = vpop.permute.xlu0 %301
  %s304 = sor.u32 256, 8
  %305 = vbcast.lane.b32.xlu0 %v299, %s304
  %v306 = vpop.permute.xlu0 %305
  %s308 = sor.u32 256, 16
  %309 = vbcast.lane.b32.xlu0 %v299, %s308
  %v310 = vpop.permute.xlu0 %309
  %s312 = sor.u32 256, 24
  %313 = vbcast.lane.b32.xlu0 %v299, %s312
  %v314 = vpop.permute.xlu0 %313
  %v315 = vlaneseq
  %v316 = vshrl.u32 %v315, 7
  %v317 = vsub.s32 1, %v316
  %v318 = vrot.slane %v295, %v317
  %320 = vbcast.lane.b32.xlu0 %v318, 256
  %v321 = vpop.permute.xlu0 %320
  %s323 = sor.u32 256, 8
  %324 = vbcast.lane.b32.xlu0 %v318, %s323
  %v325 = vpop.permute.xlu0 %324
  %s327 = sor.u32 256, 16
  %328 = vbcast.lane.b32.xlu0 %v318, %s327
  %v329 = vpop.permute.xlu0 %328
  %s331 = sor.u32 256, 24
  %332 = vbcast.lane.b32.xlu0 %v318, %s331
  %v333 = vpop.permute.xlu0 %332
  %v334 = vmul.f32 %v20, %v302
  %v335 = vmul.f32 %v21, %v302
  %v336 = vmul.f32 %v22, %v306
  %v337 = vmul.f32 %v23, %v306
  %v338 = vmul.f32 %v24, %v310
  %v339 = vmul.f32 %v25, %v310
  %v340 = vmul.f32 %v26, %v314
  %v341 = vmul.f32 %v27, %v314
  %v342 = vmul.f32 %v28, %v321
  %v343 = vmul.f32 %v29, %v321
  %v344 = vmul.f32 %v30, %v325
  %v345 = vmul.f32 %v31, %v325
  %v346 = vmul.f32 %v32, %v329
  %v347 = vmul.f32 %v33, %v329
  %v348 = vmul.f32 %v34, %v333
  %v349 = vmul.f32 %v35, %v333
  %350 = vst [vmem:[%s5] sm:$0xff] %v334
  %351 = vst [vmem:[%s5 + $0x8] sm:$0xff] %v335
  %352 = vst [vmem:[%s5 + $0x10] sm:$0xff] %v336
  %353 = vst [vmem:[%s5 + $0x18] sm:$0xff] %v337
  %354 = vst [vmem:[%s5 + $0x20] sm:$0xff] %v338
  %355 = vst [vmem:[%s5 + $0x28] sm:$0xff] %v339
  %356 = vst [vmem:[%s5 + $0x30] sm:$0xff] %v340
  %357 = vst [vmem:[%s5 + $0x38] sm:$0xff] %v341
  %358 = vst [vmem:[%s5 + $0x40] sm:$0xff] %v342
  %359 = vst [vmem:[%s5 + $0x48] sm:$0xff] %v343
  %360 = vst [vmem:[%s5 + $0x50] sm:$0xff] %v344
  %361 = vst [vmem:[%s5 + $0x58] sm:$0xff] %v345
  %362 = vst [vmem:[%s5 + $0x60] sm:$0xff] %v346
  %363 = vst [vmem:[%s5 + $0x68] sm:$0xff] %v347
  %364 = vst [vmem:[%s5 + $0x70] sm:$0xff] %v348
  %365 = vst [vmem:[%s5 + $0x78] sm:$0xff] %v349
  // Predicated region
  $region22: #{se_module_folded.1} parent=0 // pred_check
    _
  $region23: #{se_module_folded.1} parent=0 // pred_check_branch
    %367 = sbr.rel (0) target = $region25
  $region24: #{se_module_folded.1} parent=0 // pred_region
    _
  $region25: #{se_module_folded.1} parent=0 // pred_fallthru
    _
  // Predicated region
  $region26: #{se_module_folded.1} parent=0 // pred_check
    _
  $region27: #{se_module_folded.1} parent=0 // pred_check_branch
    %369 = sbr.rel (0) target = $region29
  $region28: #{se_module_folded.1} parent=0 // pred_region
    _
  $region29: #{se_module_folded.1} parent=0 // pred_fallthru
    _

</llo_original>
